<compile_context>
chip_gen: v5e
topology: v5e:2x2
jax: 0.10.0
libtpu: 0.0.40
codegen_flags: <defaults>
</compile_context>

<pallas_src>
import math

import jax
import jax.numpy as jnp
from jax.experimental import pallas as pl
from jax.experimental.pallas import tpu as pltpu

# Fixed (non-learned) Gaussian kernel from the module __init__ — identical for
# every channel, baked in as compile-time constants.
_GAUSS_5x5 = (
    (0.00078633, 0.00655965, 0.01330373, 0.00655965, 0.00078633),
    (0.00655965, 0.05472157, 0.11098164, 0.05472157, 0.00655965),
    (0.01330373, 0.11098164, 0.22508352, 0.11098164, 0.01330373),
    (0.00655965, 0.05472157, 0.11098164, 0.05472157, 0.00655965),
    (0.00078633, 0.00655965, 0.01330373, 0.00655965, 0.00078633),
)

# The 5x5 table is (a rounded) outer product of a 1D Gaussian.  Recover the 1D
# factor in float64 Python math: a[i] = row_sum[i] / sqrt(total).  Max per-tap
# deviation of a⊗a from the original 2D weights is ~4e-8 (well inside 1e-5).
_ROW_SUMS = tuple(math.fsum(row) for row in _GAUSS_5x5)
_TOTAL = math.fsum(_ROW_SUMS)
_GAUSS_1D = tuple(rs / math.sqrt(_TOTAL) for rs in _ROW_SUMS)


def _blur_kernel(x_ref, o_ref, wpad_ref, hpad_ref):
    # x_ref   : (Pb, H, W)    input planes (N*C collapsed, Pb planes / step)
    # o_ref   : (Pb, H, W)    output planes
    # wpad_ref: (Pb, H, W+4)  f32 scratch — input + 2-lane zero halo each side
    # hpad_ref: (Pb, H+4, W)  f32 scratch — horizontal result + 2-row zero halo
    Pb, H, W = o_ref.shape

    # ---- horizontal 5-tap pass (lane axis) -------------------------------
    # Zero only the two 2-lane halo strips (review item 1) — NOT the whole
    # buffer, and NOT a program_id==0-only init (wrong on 2-TC chips with
    # "parallel" semantics: each core owns a private scratch).
    wpad_ref[:, :, 0:2] = jnp.zeros((Pb, H, 2), jnp.float32)
    wpad_ref[:, :, W + 2:W + 4] = jnp.zeros((Pb, H, 2), jnp.float32)
    # Single up-cast of the tile; interior write at lane offset 2.
    wpad_ref[:, :, 2:2 + W] = x_ref[...].astype(jnp.float32)

    h = _GAUSS_1D[0] * wpad_ref[:, :, 0:W]
    for t in range(1, 5):
        h = h + _GAUSS_1D[t] * wpad_ref[:, :, t:t + W]

    # ---- vertical 5-tap pass (sublane axis) ------------------------------
    # Only the H live rows of the horizontal result are computed/stored
    # (review item 9); the 4 halo rows are cheap strip zero-fills.
    hpad_ref[:, 0:2, :] = jnp.zeros((Pb, 2, W), jnp.float32)
    hpad_ref[:, H + 2:H + 4, :] = jnp.zeros((Pb, 2, W), jnp.float32)
    hpad_ref[:, 2:2 + H, :] = h

    acc = _GAUSS_1D[0] * hpad_ref[:, 0:H, :]
    for t in range(1, 5):
        acc = acc + _GAUSS_1D[t] * hpad_ref[:, t:t + H, :]
    o_ref[...] = acc.astype(o_ref.dtype)


def _tpu_vmem_capacity_bytes():
    try:
        return int(pltpu.get_tpu_info().vmem_capacity_bytes)
    except Exception:
        return 64 * 1024 * 1024  # conservative (v7x-sized) fallback


def _num_tensorcores_per_chip():
    try:
        dev = jax.devices()[0]
        n = getattr(dev, "num_cores", None)
        if isinstance(n, int) and n >= 1:
            return n
        if "v7" in str(getattr(dev, "device_kind", "")).lower():
            return 2
    except Exception:
        pass
    return 1


def _plane_batch(P, H, W, itemsize):
    """Pick how many (n, c) planes to process per grid step (review items 3-6)."""
    vmem_cap = _tpu_vmem_capacity_bytes()
    vmem_limit = int(vmem_cap * 0.75)   # scoped limit with ~25% compiler headroom
    budget = int(vmem_cap * 0.60)       # our own buffers sized against ~60%

    per_plane = (
        2 * H * W * itemsize            # double-buffered input block
        + 2 * H * W * itemsize          # double-buffered output block
        + H * (W + 4) * 4               # horizontal-pass padded scratch (f32)
        + (H + 4) * W * 4               # vertical-pass padded scratch (f32)
    )
    pb = max(1, min(P, budget // max(per_plane, 1)))

    # Only multi-TensorCore chips (v7x) benefit from forcing >=2 grid steps so
    # the "parallel" plane axis can shard across cores; on 1-TC v5e/v6e the
    # cap would just shrink the DMAs for no benefit (review item 5).
    if _num_tensorcores_per_chip() >= 2 and P >= 2:
        pb = min(pb, pl.cdiv(P, 2))
    return int(pb), vmem_limit


def gaussian_blur_conv(x):
    """x: (N, C, H, W) -> (N, C, H, W); same semantics as
    F.conv2d(x, gauss_5x5, padding=2, groups=C)."""
    N, C, H, W = x.shape
    P = N * C
    xp = x.reshape(P, H, W)            # free reshape — no HBM pad pass
    Pb, vmem_limit = _plane_batch(P, H, W, x.dtype.itemsize)

    out = pl.pallas_call(
        _blur_kernel,
        out_shape=jax.ShapeDtypeStruct((P, H, W), x.dtype),
        grid_spec=pltpu.PrefetchScalarGridSpec(
            num_scalar_prefetch=0,
            # cdiv grid + Pallas tail-block clamping: no divisor constraint on
            # P (review item 6).  Tail garbage planes never mix into valid
            # planes (per-plane stencil) and their writes are dropped.
            grid=(pl.cdiv(P, Pb),),
            in_specs=[pl.BlockSpec((Pb, H, W), lambda p: (p, 0, 0))],
            out_specs=pl.BlockSpec((Pb, H, W), lambda p: (p, 0, 0)),
            scratch_shapes=[
                pltpu.VMEM((Pb, H, W + 4), jnp.float32),  # horizontal halo buf
                pltpu.VMEM((Pb, H + 4, W), jnp.float32),  # vertical halo buf
            ],
        ),
        compiler_params=pltpu.CompilerParams(
            dimension_semantics=("parallel",),
            vmem_limit_bytes=vmem_limit,
        ),
    )(xp)
    return out.reshape(N, C, H, W)


def _reference(x):
    # Pure-JAX reference: depthwise conv with the exact 2D weights.
    N, C, H, W = x.shape
    k = jnp.asarray(_GAUSS_5x5, dtype=jnp.float32)
    w = jnp.broadcast_to(k[None, None], (C, 1, 5, 5))  # (out=C, in/group=1, 5, 5)
    return jax.lax.conv_general_dilated(
        x.astype(jnp.float32), w,
        window_strides=(1, 1), padding=((2, 2), (2, 2)),
        feature_group_count=C,
        dimension_numbers=("NCHW", "OIHW", "NCHW"),
        precision=jax.lax.Precision.HIGHEST,
    ).astype(x.dtype)


if __name__ == "__main__":
    key = jax.random.PRNGKey(0)
    N, C, H, W = 2, 4, 16, 16
    x = jax.random.normal(key, (N, C, H, W), dtype=jnp.float32)

    y = gaussian_blur_conv(x)
    y = jax.block_until_ready(y)

    y_ref = _reference(x)
    assert y.shape == (N, C, H, W)
    assert jnp.allclose(y, y_ref, atol=1e-5, rtol=1e-5), "mismatch vs reference"

    print("KERNEL_OK")
</pallas_src>

<mosaic_0001>
module attributes {stable_mosaic.version = 11 : i64} {
  func.func @_blur_kernel(%arg0: i32, %arg1: memref<8x16x16xf32, #tpu.memory_space<vmem>>, %arg2: memref<8x16x16xf32, #tpu.memory_space<vmem>>, %arg3: memref<8x16x20xf32, #tpu.memory_space<vmem>>, %arg4: memref<8x20x16xf32, #tpu.memory_space<vmem>>) attributes {dimension_semantics = [#tpu.dimension_semantics<parallel>], iteration_bounds = array<i64: 1>, scalar_prefetch = 0 : i64, scratch_operands = 2 : i64, tpu.core_type = #tpu.core_type<tc>, window_params = [{transform_indices = @transform_0, window_bounds = array<i64: 8, 16, 16>}, {transform_indices = @transform_1, window_bounds = array<i64: 8, 16, 16>}]} {
    %cst = arith.constant 0.000000e+00 : f32
    %0 = vector.broadcast %cst : f32 to vector<8x16x2xf32>
    %c0 = arith.constant 0 : index
    %c0_0 = arith.constant 0 : index
    %c0_1 = arith.constant 0 : index
    %1 = vector.load %arg3[%c0, %c0_0, %c0_1] : memref<8x16x20xf32, #tpu.memory_space<vmem>>, vector<8x16x2xf32>
    tpu.vector_store %arg3[%c0, %c0_0, %c0_1], %0 {strides = array<i32>} : memref<8x16x20xf32, #tpu.memory_space<vmem>>, vector<8x16x2xf32>,
    %cst_2 = arith.constant 0.000000e+00 : f32
    %2 = vector.broadcast %cst_2 : f32 to vector<8x16x2xf32>
    %c0_3 = arith.constant 0 : index
    %c0_4 = arith.constant 0 : index
    %c18 = arith.constant 18 : index
    %3 = vector.load %arg3[%c0_3, %c0_4, %c18] : memref<8x16x20xf32, #tpu.memory_space<vmem>>, vector<8x16x2xf32>
    tpu.vector_store %arg3[%c0_3, %c0_4, %c18], %2 {strides = array<i32>} : memref<8x16x20xf32, #tpu.memory_space<vmem>>, vector<8x16x2xf32>,
    %c0_5 = arith.constant 0 : index
    %c0_6 = arith.constant 0 : index
    %c0_7 = arith.constant 0 : index
    %4 = vector.load %arg1[%c0_5, %c0_6, %c0_7] : memref<8x16x16xf32, #tpu.memory_space<vmem>>, vector<8x16x16xf32>
    %c0_8 = arith.constant 0 : index
    %c0_9 = arith.constant 0 : index
    %c2 = arith.constant 2 : index
    %5 = vector.load %arg3[%c0_8, %c0_9, %c2] : memref<8x16x20xf32, #tpu.memory_space<vmem>>, vector<8x16x16xf32>
    tpu.vector_store %arg3[%c0_8, %c0_9, %c2], %4 {strides = array<i32>} : memref<8x16x20xf32, #tpu.memory_space<vmem>>, vector<8x16x16xf32>,
    %c0_10 = arith.constant 0 : index
    %c0_11 = arith.constant 0 : index
    %c0_12 = arith.constant 0 : index
    %6 = vector.load %arg3[%c0_10, %c0_11, %c0_12] : memref<8x16x20xf32, #tpu.memory_space<vmem>>, vector<8x16x16xf32>
    %cst_13 = arith.constant 0.0280415229 : f32
    %7 = vector.broadcast %cst_13 : f32 to vector<8x16x16xf32>
    %8 = arith.mulf %7, %6 : vector<8x16x16xf32>
    %c0_14 = arith.constant 0 : index
    %c0_15 = arith.constant 0 : index
    %c1 = arith.constant 1 : index
    %9 = vector.load %arg3[%c0_14, %c0_15, %c1] : memref<8x16x20xf32, #tpu.memory_space<vmem>>, vector<8x16x16xf32>
    %cst_16 = arith.constant 0.233926415 : f32
    %10 = vector.broadcast %cst_16 : f32 to vector<8x16x16xf32>
    %11 = arith.mulf %10, %9 : vector<8x16x16xf32>
    %12 = arith.addf %8, %11 : vector<8x16x16xf32>
    %c0_17 = arith.constant 0 : index
    %c0_18 = arith.constant 0 : index
    %c2_19 = arith.constant 2 : index
    %13 = vector.load %arg3[%c0_17, %c0_18, %c2_19] : memref<8x16x20xf32, #tpu.memory_space<vmem>>, vector<8x16x16xf32>
    %cst_20 = arith.constant 0.474429697 : f32
    %14 = vector.broadcast %cst_20 : f32 to vector<8x16x16xf32>
    %15 = arith.mulf %14, %13 : vector<8x16x16xf32>
    %16 = arith.addf %12, %15 : vector<8x16x16xf32>
    %c0_21 = arith.constant 0 : index
    %c0_22 = arith.constant 0 : index
    %c3 = arith.constant 3 : index
    %17 = vector.load %arg3[%c0_21, %c0_22, %c3] : memref<8x16x20xf32, #tpu.memory_space<vmem>>, vector<8x16x16xf32>
    %cst_23 = arith.constant 0.233926415 : f32
    %18 = vector.broadcast %cst_23 : f32 to vector<8x16x16xf32>
    %19 = arith.mulf %18, %17 : vector<8x16x16xf32>
    %20 = arith.addf %16, %19 : vector<8x16x16xf32>
    %c0_24 = arith.constant 0 : index
    %c0_25 = arith.constant 0 : index
    %c4 = arith.constant 4 : index
    %21 = vector.load %arg3[%c0_24, %c0_25, %c4] : memref<8x16x20xf32, #tpu.memory_space<vmem>>, vector<8x16x16xf32>
    %cst_26 = arith.constant 0.0280415229 : f32
    %22 = vector.broadcast %cst_26 : f32 to vector<8x16x16xf32>
    %23 = arith.mulf %22, %21 : vector<8x16x16xf32>
    %24 = arith.addf %20, %23 : vector<8x16x16xf32>
    %cst_27 = arith.constant 0.000000e+00 : f32
    %25 = vector.broadcast %cst_27 : f32 to vector<8x2x16xf32>
    %c0_28 = arith.constant 0 : index
    %c0_29 = arith.constant 0 : index
    %c0_30 = arith.constant 0 : index
    %26 = vector.load %arg4[%c0_28, %c0_29, %c0_30] : memref<8x20x16xf32, #tpu.memory_space<vmem>>, vector<8x2x16xf32>
    tpu.vector_store %arg4[%c0_28, %c0_29, %c0_30], %25 {strides = array<i32>} : memref<8x20x16xf32, #tpu.memory_space<vmem>>, vector<8x2x16xf32>,
    %cst_31 = arith.constant 0.000000e+00 : f32
    %27 = vector.broadcast %cst_31 : f32 to vector<8x2x16xf32>
    %c0_32 = arith.constant 0 : index
    %c18_33 = arith.constant 18 : index
    %c0_34 = arith.constant 0 : index
    %28 = vector.load %arg4[%c0_32, %c18_33, %c0_34] : memref<8x20x16xf32, #tpu.memory_space<vmem>>, vector<8x2x16xf32>
    tpu.vector_store %arg4[%c0_32, %c18_33, %c0_34], %27 {strides = array<i32>} : memref<8x20x16xf32, #tpu.memory_space<vmem>>, vector<8x2x16xf32>,
    %c0_35 = arith.constant 0 : index
    %c2_36 = arith.constant 2 : index
    %c0_37 = arith.constant 0 : index
    %29 = vector.load %arg4[%c0_35, %c2_36, %c0_37] : memref<8x20x16xf32, #tpu.memory_space<vmem>>, vector<8x16x16xf32>
    tpu.vector_store %arg4[%c0_35, %c2_36, %c0_37], %24 {strides = array<i32>} : memref<8x20x16xf32, #tpu.memory_space<vmem>>, vector<8x16x16xf32>,
    %c0_38 = arith.constant 0 : index
    %c0_39 = arith.constant 0 : index
    %c0_40 = arith.constant 0 : index
    %30 = vector.load %arg4[%c0_38, %c0_39, %c0_40] : memref<8x20x16xf32, #tpu.memory_space<vmem>>, vector<8x16x16xf32>
    %cst_41 = arith.constant 0.0280415229 : f32
    %31 = vector.broadcast %cst_41 : f32 to vector<8x16x16xf32>
    %32 = arith.mulf %31, %30 : vector<8x16x16xf32>
    %c0_42 = arith.constant 0 : index
    %c1_43 = arith.constant 1 : index
    %c0_44 = arith.constant 0 : index
    %33 = vector.load %arg4[%c0_42, %c1_43, %c0_44] : memref<8x20x16xf32, #tpu.memory_space<vmem>>, vector<8x16x16xf32>
    %cst_45 = arith.constant 0.233926415 : f32
    %34 = vector.broadcast %cst_45 : f32 to vector<8x16x16xf32>
    %35 = arith.mulf %34, %33 : vector<8x16x16xf32>
    %36 = arith.addf %32, %35 : vector<8x16x16xf32>
    %c0_46 = arith.constant 0 : index
    %c2_47 = arith.constant 2 : index
    %c0_48 = arith.constant 0 : index
    %37 = vector.load %arg4[%c0_46, %c2_47, %c0_48] : memref<8x20x16xf32, #tpu.memory_space<vmem>>, vector<8x16x16xf32>
    %cst_49 = arith.constant 0.474429697 : f32
    %38 = vector.broadcast %cst_49 : f32 to vector<8x16x16xf32>
    %39 = arith.mulf %38, %37 : vector<8x16x16xf32>
    %40 = arith.addf %36, %39 : vector<8x16x16xf32>
    %c0_50 = arith.constant 0 : index
    %c3_51 = arith.constant 3 : index
    %c0_52 = arith.constant 0 : index
    %41 = vector.load %arg4[%c0_50, %c3_51, %c0_52] : memref<8x20x16xf32, #tpu.memory_space<vmem>>, vector<8x16x16xf32>
    %cst_53 = arith.constant 0.233926415 : f32
    %42 = vector.broadcast %cst_53 : f32 to vector<8x16x16xf32>
    %43 = arith.mulf %42, %41 : vector<8x16x16xf32>
    %44 = arith.addf %40, %43 : vector<8x16x16xf32>
    %c0_54 = arith.constant 0 : index
    %c4_55 = arith.constant 4 : index
    %c0_56 = arith.constant 0 : index
    %45 = vector.load %arg4[%c0_54, %c4_55, %c0_56] : memref<8x20x16xf32, #tpu.memory_space<vmem>>, vector<8x16x16xf32>
    %cst_57 = arith.constant 0.0280415229 : f32
    %46 = vector.broadcast %cst_57 : f32 to vector<8x16x16xf32>
    %47 = arith.mulf %46, %45 : vector<8x16x16xf32>
    %48 = arith.addf %44, %47 : vector<8x16x16xf32>
    %c0_58 = arith.constant 0 : index
    %c0_59 = arith.constant 0 : index
    %c0_60 = arith.constant 0 : index
    %49 = vector.load %arg2[%c0_58, %c0_59, %c0_60] : memref<8x16x16xf32, #tpu.memory_space<vmem>>, vector<8x16x16xf32>
    tpu.vector_store %arg2[%c0_58, %c0_59, %c0_60], %48 {strides = array<i32>} : memref<8x16x16xf32, #tpu.memory_space<vmem>>, vector<8x16x16xf32>,
    return
  }
  func.func @transform_0(%arg0: i32) -> (i32, i32, i32) {
    %c0_i32 = arith.constant 0 : i32
    %c0_i32_0 = arith.constant 0 : i32
    %c0_i32_1 = arith.constant 0 : i32
    return %arg0, %c0_i32, %c0_i32_0 : i32, i32, i32
  }
  func.func @transform_1(%arg0: i32) -> (i32, i32, i32) {
    %c0_i32 = arith.constant 0 : i32
    %c0_i32_0 = arith.constant 0 : i32
    %c0_i32_1 = arith.constant 0 : i32
    return %arg0, %c0_i32, %c0_i32_0 : i32, i32, i32
  }
}

</mosaic_0001>

<llo_original>
// kernel: tpu_custom_call.1
$region0: #{tpu_custom_call.1}
  #allocation0 [shape = 'u32[]', space=smem, size = 0x4, offset = 0x4, fixed_abs, tag = 'smem constant byte address 0x4 - core index']
  #allocation1 [shape = 'u32[72,128]{1,0:T(1,128)}', space=vmem, size = 0x9000, scoped, tag = 'internal scratch']
  #allocation2 [shape = 'f32[8,16,20]{2,1,0:T(8,128)}', space=vmem, size = 0x10000, scoped, tag = 'scratch operand']
  #allocation3 [shape = 'f32[8,20,16]{2,1,0:T(8,128)}', space=vmem, size = 0x18000, scoped, tag = 'scratch operand']
  %s0 = inlined_call_operand.hbm [shape: f32[8,16,16], index: 0, kind: input, shape index: {}]
  %s1 = inlined_call_operand.hbm [shape: f32[8,16,16], index: 1, kind: output, shape index: {}]
  %s2 = sld [smem:[#allocation0]]
  $region18: #{tpu_custom_call.1} parent=0
    _
  %s4 = ssub.s32 1, %s2
  %s5 = scalar_select 0, %s4, %s2
  $region1: #{tpu_custom_call.1} parent=0
    #allocation4 [shape = 'u8[65536]{0}', space=vmem, size = 0x10000, scoped, tag = 'input window, operand 0, single buffered']
    #allocation5 [shape = 's32[1]{0}', space=sflag, size = 0x4, scoped, tag = 'scoped memory for tpu_custom_call.1']
    #allocation6 [shape = 's32[1]{0}', space=sflag, size = 0x4, scoped, tag = 'scoped memory for tpu_custom_call.1']
    #allocation7 [shape = 'u8[65536]{0}', space=vmem, size = 0x10000, scoped, tag = 'output window, operand 0, single buffered']
    %6 = vsyncpa [#allocation5], 0
    %7 = vsyncpa [#allocation6], 0
    // Predicated region
    $region2: #{tpu_custom_call.1} parent=1 // pred_check
      _
    $region3: #{tpu_custom_call.1} parent=1 // pred_check_branch
      %9 = sbr.rel (0) target = $region5
    $region4: #{tpu_custom_call.1} parent=1 // pred_region
      %11 = vsyncadd [#allocation5], 0
      %s12 = sshll.u32 %s0, 4
      %s13 = int_to_ptr.hbm [resolvable:$true] %s12
      %s14 = sshll.u32 [#allocation4], 4
      %s15 = int_to_ptr.vmem [resolvable:$true] %s14
      %20 = dma.hbm_to_vmem [thread:$0]  %s13, 2048, %s15, [#allocation5], 128, 128, 8
    $region5: #{tpu_custom_call.1} parent=1 // pred_fallthru
      _
    // Predicated region
    $region6: #{tpu_custom_call.1} parent=1 // pred_check
      _
    $region7: #{tpu_custom_call.1} parent=1 // pred_check_branch
      %22 = sbr.rel (0) target = $region9
    $region8: #{tpu_custom_call.1} parent=1 // pred_region
      %24 = dma.done [#allocation5], 2048
    $region9: #{tpu_custom_call.1} parent=1 // pred_fallthru
      _
    %vm25 = vcmask 15360
    %26 = vst.msk [vmem:[#allocation2] sm:$0xff] %vm25, 0.0
    %27 = vst.msk [vmem:[#allocation2 + $0x8] sm:$0xff] %vm25, 0.0
    %28 = vst.msk [vmem:[#allocation2 + $0x10] sm:$0xff] %vm25, 0.0
    %29 = vst.msk [vmem:[#allocation2 + $0x18] sm:$0xff] %vm25, 0.0
    %30 = vst.msk [vmem:[#allocation2 + $0x20] sm:$0xff] %vm25, 0.0
    %31 = vst.msk [vmem:[#allocation2 + $0x28] sm:$0xff] %vm25, 0.0
    %32 = vst.msk [vmem:[#allocation2 + $0x30] sm:$0xff] %vm25, 0.0
    %33 = vst.msk [vmem:[#allocation2 + $0x38] sm:$0xff] %vm25, 0.0
    %34 = vst.msk [vmem:[#allocation2 + $0x40] sm:$0xff] %vm25, 0.0
    %35 = vst.msk [vmem:[#allocation2 + $0x48] sm:$0xff] %vm25, 0.0
    %36 = vst.msk [vmem:[#allocation2 + $0x50] sm:$0xff] %vm25, 0.0
    %37 = vst.msk [vmem:[#allocation2 + $0x58] sm:$0xff] %vm25, 0.0
    %38 = vst.msk [vmem:[#allocation2 + $0x60] sm:$0xff] %vm25, 0.0
    %39 = vst.msk [vmem:[#allocation2 + $0x68] sm:$0xff] %vm25, 0.0
    %40 = vst.msk [vmem:[#allocation2 + $0x70] sm:$0xff] %vm25, 0.0
    %41 = vst.msk [vmem:[#allocation2 + $0x78] sm:$0xff] %vm25, 0.0
    %vm42 = vcmask 162960
    %43 = vst.msk [vmem:[#allocation2] sm:$0xff] %vm42, 0.0
    %44 = vst.msk [vmem:[#allocation2 + $0x8] sm:$0xff] %vm42, 0.0
    %45 = vst.msk [vmem:[#allocation2 + $0x10] sm:$0xff] %vm42, 0.0
    %46 = vst.msk [vmem:[#allocation2 + $0x18] sm:$0xff] %vm42, 0.0
    %47 = vst.msk [vmem:[#allocation2 + $0x20] sm:$0xff] %vm42, 0.0
    %48 = vst.msk [vmem:[#allocation2 + $0x28] sm:$0xff] %vm42, 0.0
    %49 = vst.msk [vmem:[#allocation2 + $0x30] sm:$0xff] %vm42, 0.0
    %50 = vst.msk [vmem:[#allocation2 + $0x38] sm:$0xff] %vm42, 0.0
    %51 = vst.msk [vmem:[#allocation2 + $0x40] sm:$0xff] %vm42, 0.0
    %52 = vst.msk [vmem:[#allocation2 + $0x48] sm:$0xff] %vm42, 0.0
    %53 = vst.msk [vmem:[#allocation2 + $0x50] sm:$0xff] %vm42, 0.0
    %54 = vst.msk [vmem:[#allocation2 + $0x58] sm:$0xff] %vm42, 0.0
    %55 = vst.msk [vmem:[#allocation2 + $0x60] sm:$0xff] %vm42, 0.0
    %56 = vst.msk [vmem:[#allocation2 + $0x68] sm:$0xff] %vm42, 0.0
    %57 = vst.msk [vmem:[#allocation2 + $0x70] sm:$0xff] %vm42, 0.0
    %58 = vst.msk [vmem:[#allocation2 + $0x78] sm:$0xff] %vm42, 0.0
    %v59 = vld [vmem:[#allocation4] sm:$0xff]
    %v60 = vld [vmem:[#allocation4 + $0x8] sm:$0xff]
    %v61 = vld [vmem:[#allocation4 + $0x10] sm:$0xff]
    %v62 = vld [vmem:[#allocation4 + $0x18] sm:$0xff]
    %v63 = vld [vmem:[#allocation4 + $0x20] sm:$0xff]
    %v64 = vld [vmem:[#allocation4 + $0x28] sm:$0xff]
    %v65 = vld [vmem:[#allocation4 + $0x30] sm:$0xff]
    %v66 = vld [vmem:[#allocation4 + $0x38] sm:$0xff]
    %v67 = vld [vmem:[#allocation4 + $0x40] sm:$0xff]
    %v68 = vld [vmem:[#allocation4 + $0x48] sm:$0xff]
    %v69 = vld [vmem:[#allocation4 + $0x50] sm:$0xff]
    %v70 = vld [vmem:[#allocation4 + $0x58] sm:$0xff]
    %v71 = vld [vmem:[#allocation4 + $0x60] sm:$0xff]
    %v72 = vld [vmem:[#allocation4 + $0x68] sm:$0xff]
    %v73 = vld [vmem:[#allocation4 + $0x70] sm:$0xff]
    %v74 = vld [vmem:[#allocation4 + $0x78] sm:$0xff]
    %91 = vrot.lane.b32.xlu0 %v59, 2
    %v92 = vpop.permute.xlu0 %91
    %93 = vrot.lane.b32.xlu0 %v60, 2
    %v94 = vpop.permute.xlu0 %93
    %95 = vrot.lane.b32.xlu0 %v61, 2
    %v96 = vpop.permute.xlu0 %95
    %97 = vrot.lane.b32.xlu0 %v62, 2
    %v98 = vpop.permute.xlu0 %97
    %99 = vrot.lane.b32.xlu0 %v63, 2
    %v100 = vpop.permute.xlu0 %99
    %101 = vrot.lane.b32.xlu0 %v64, 2
    %v102 = vpop.permute.xlu0 %101
    %103 = vrot.lane.b32.xlu0 %v65, 2
    %v104 = vpop.permute.xlu0 %103
    %105 = vrot.lane.b32.xlu0 %v66, 2
    %v106 = vpop.permute.xlu0 %105
    %107 = vrot.lane.b32.xlu0 %v67, 2
    %v108 = vpop.permute.xlu0 %107
    %109 = vrot.lane.b32.xlu0 %v68, 2
    %v110 = vpop.permute.xlu0 %109
    %111 = vrot.lane.b32.xlu0 %v69, 2
    %v112 = vpop.permute.xlu0 %111
    %113 = vrot.lane.b32.xlu0 %v70, 2
    %v114 = vpop.permute.xlu0 %113
    %115 = vrot.lane.b32.xlu0 %v71, 2
    %v116 = vpop.permute.xlu0 %115
    %117 = vrot.lane.b32.xlu0 %v72, 2
    %v118 = vpop.permute.xlu0 %117
    %119 = vrot.lane.b32.xlu0 %v73, 2
    %v120 = vpop.permute.xlu0 %119
    %121 = vrot.lane.b32.xlu0 %v74, 2
    %v122 = vpop.permute.xlu0 %121
    %vm139 = vcmask 146448
    %140 = vst.msk [vmem:[#allocation2] sm:$0xff] %vm139, %v92
    %141 = vst.msk [vmem:[#allocation2 + $0x8] sm:$0xff] %vm139, %v94
    %142 = vst.msk [vmem:[#allocation2 + $0x10] sm:$0xff] %vm139, %v96
    %143 = vst.msk [vmem:[#allocation2 + $0x18] sm:$0xff] %vm139, %v98
    %144 = vst.msk [vmem:[#allocation2 + $0x20] sm:$0xff] %vm139, %v100
    %145 = vst.msk [vmem:[#allocation2 + $0x28] sm:$0xff] %vm139, %v102
    %146 = vst.msk [vmem:[#allocation2 + $0x30] sm:$0xff] %vm139, %v104
    %147 = vst.msk [vmem:[#allocation2 + $0x38] sm:$0xff] %vm139, %v106
    %148 = vst.msk [vmem:[#allocation2 + $0x40] sm:$0xff] %vm139, %v108
    %149 = vst.msk [vmem:[#allocation2 + $0x48] sm:$0xff] %vm139, %v110
    %150 = vst.msk [vmem:[#allocation2 + $0x50] sm:$0xff] %vm139, %v112
    %151 = vst.msk [vmem:[#allocation2 + $0x58] sm:$0xff] %vm139, %v114
    %152 = vst.msk [vmem:[#allocation2 + $0x60] sm:$0xff] %vm139, %v116
    %153 = vst.msk [vmem:[#allocation2 + $0x68] sm:$0xff] %vm139, %v118
    %154 = vst.msk [vmem:[#allocation2 + $0x70] sm:$0xff] %vm139, %v120
    %155 = vst.msk [vmem:[#allocation2 + $0x78] sm:$0xff] %vm139, %v122
    %v156 = vld [vmem:[#allocation2] sm:$0xff]
    %v157 = vld [vmem:[#allocation2 + $0x8] sm:$0xff]
    %v158 = vld [vmem:[#allocation2 + $0x10] sm:$0xff]
    %v159 = vld [vmem:[#allocation2 + $0x18] sm:$0xff]
    %v160 = vld [vmem:[#allocation2 + $0x20] sm:$0xff]
    %v161 = vld [vmem:[#allocation2 + $0x28] sm:$0xff]
    %v162 = vld [vmem:[#allocation2 + $0x30] sm:$0xff]
    %v163 = vld [vmem:[#allocation2 + $0x38] sm:$0xff]
    %v164 = vld [vmem:[#allocation2 + $0x40] sm:$0xff]
    %v165 = vld [vmem:[#allocation2 + $0x48] sm:$0xff]
    %v166 = vld [vmem:[#allocation2 + $0x50] sm:$0xff]
    %v167 = vld [vmem:[#allocation2 + $0x58] sm:$0xff]
    %v168 = vld [vmem:[#allocation2 + $0x60] sm:$0xff]
    %v169 = vld [vmem:[#allocation2 + $0x68] sm:$0xff]
    %v170 = vld [vmem:[#allocation2 + $0x70] sm:$0xff]
    %v171 = vld [vmem:[#allocation2 + $0x78] sm:$0xff]
    %v172 = vmul.f32 %v156, 0.028041523
    %v173 = vmul.f32 %v157, 0.028041523
    %v174 = vmul.f32 %v158, 0.028041523
    %v175 = vmul.f32 %v159, 0.028041523
    %v176 = vmul.f32 %v160, 0.028041523
    %v177 = vmul.f32 %v161, 0.028041523
    %v178 = vmul.f32 %v162, 0.028041523
    %v179 = vmul.f32 %v163, 0.028041523
    %v180 = vmul.f32 %v164, 0.028041523
    %v181 = vmul.f32 %v165, 0.028041523
    %v182 = vmul.f32 %v166, 0.028041523
    %v183 = vmul.f32 %v167, 0.028041523
    %v184 = vmul.f32 %v168, 0.028041523
    %v185 = vmul.f32 %v169, 0.028041523
    %v186 = vmul.f32 %v170, 0.028041523
    %v187 = vmul.f32 %v171, 0.028041523
    %v188 = vmul.f32 %v156, 0.23392642
    %v189 = vmul.f32 %v157, 0.23392642
    %v190 = vmul.f32 %v158, 0.23392642
    %v191 = vmul.f32 %v159, 0.23392642
    %v192 = vmul.f32 %v160, 0.23392642
    %v193 = vmul.f32 %v161, 0.23392642
    %v194 = vmul.f32 %v162, 0.23392642
    %v195 = vmul.f32 %v163, 0.23392642
    %v196 = vmul.f32 %v164, 0.23392642
    %v197 = vmul.f32 %v165, 0.23392642
    %v198 = vmul.f32 %v166, 0.23392642
    %v199 = vmul.f32 %v167, 0.23392642
    %v200 = vmul.f32 %v168, 0.23392642
    %v201 = vmul.f32 %v169, 0.23392642
    %v202 = vmul.f32 %v170, 0.23392642
    %v203 = vmul.f32 %v171, 0.23392642
    %220 = vrot.lane.b32.xlu0 %v188, 127
    %v221 = vpop.permute.xlu0 %220
    %222 = vrot.lane.b32.xlu0 %v189, 127
    %v223 = vpop.permute.xlu0 %222
    %224 = vrot.lane.b32.xlu0 %v190, 127
    %v225 = vpop.permute.xlu0 %224
    %226 = vrot.lane.b32.xlu0 %v191, 127
    %v227 = vpop.permute.xlu0 %226
    %228 = vrot.lane.b32.xlu0 %v192, 127
    %v229 = vpop.permute.xlu0 %228
    %230 = vrot.lane.b32.xlu0 %v193, 127
    %v231 = vpop.permute.xlu0 %230
    %232 = vrot.lane.b32.xlu0 %v194, 127
    %v233 = vpop.permute.xlu0 %232
    %234 = vrot.lane.b32.xlu0 %v195, 127
    %v235 = vpop.permute.xlu0 %234
    %236 = vrot.lane.b32.xlu0 %v196, 127
    %v237 = vpop.permute.xlu0 %236
    %238 = vrot.lane.b32.xlu0 %v197, 127
    %v239 = vpop.permute.xlu0 %238
    %240 = vrot.lane.b32.xlu0 %v198, 127
    %v241 = vpop.permute.xlu0 %240
    %242 = vrot.lane.b32.xlu0 %v199, 127
    %v243 = vpop.permute.xlu0 %242
    %244 = vrot.lane.b32.xlu0 %v200, 127
    %v245 = vpop.permute.xlu0 %244
    %246 = vrot.lane.b32.xlu0 %v201, 127
    %v247 = vpop.permute.xlu0 %246
    %248 = vrot.lane.b32.xlu0 %v202, 127
    %v249 = vpop.permute.xlu0 %248
    %250 = vrot.lane.b32.xlu0 %v203, 127
    %v251 = vpop.permute.xlu0 %250
    %v268 = vadd.f32 %v172, %v221
    %v269 = vadd.f32 %v173, %v223
    %v270 = vadd.f32 %v174, %v225
    %v271 = vadd.f32 %v175, %v227
    %v272 = vadd.f32 %v176, %v229
    %v273 = vadd.f32 %v177, %v231
    %v274 = vadd.f32 %v178, %v233
    %v275 = vadd.f32 %v179, %v235
    %v276 = vadd.f32 %v180, %v237
    %v277 = vadd.f32 %v181, %v239
    %v278 = vadd.f32 %v182, %v241
    %v279 = vadd.f32 %v183, %v243
    %v280 = vadd.f32 %v184, %v245
    %v281 = vadd.f32 %v185, %v247
    %v282 = vadd.f32 %v186, %v249
    %v283 = vadd.f32 %v187, %v251
    %v284 = vmul.f32 %v156, 0.4744297
    %v285 = vmul.f32 %v157, 0.4744297
    %v286 = vmul.f32 %v158, 0.4744297
    %v287 = vmul.f32 %v159, 0.4744297
    %v288 = vmul.f32 %v160, 0.4744297
    %v289 = vmul.f32 %v161, 0.4744297
    %v290 = vmul.f32 %v162, 0.4744297
    %v291 = vmul.f32 %v163, 0.4744297
    %v292 = vmul.f32 %v164, 0.4744297
    %v293 = vmul.f32 %v165, 0.4744297
    %v294 = vmul.f32 %v166, 0.4744297
    %v295 = vmul.f32 %v167, 0.4744297
    %v296 = vmul.f32 %v168, 0.4744297
    %v297 = vmul.f32 %v169, 0.4744297
    %v298 = vmul.f32 %v170, 0.4744297
    %v299 = vmul.f32 %v171, 0.4744297
    %316 = vrot.lane.b32.xlu0 %v284, 126
    %v317 = vpop.permute.xlu0 %316
    %318 = vrot.lane.b32.xlu0 %v285, 126
    %v319 = vpop.permute.xlu0 %318
    %320 = vrot.lane.b32.xlu0 %v286, 126
    %v321 = vpop.permute.xlu0 %320
    %322 = vrot.lane.b32.xlu0 %v287, 126
    %v323 = vpop.permute.xlu0 %322
    %324 = vrot.lane.b32.xlu0 %v288, 126
    %v325 = vpop.permute.xlu0 %324
    %326 = vrot.lane.b32.xlu0 %v289, 126
    %v327 = vpop.permute.xlu0 %326
    %328 = vrot.lane.b32.xlu0 %v290, 126
    %v329 = vpop.permute.xlu0 %328
    %330 = vrot.lane.b32.xlu0 %v291, 126
    %v331 = vpop.permute.xlu0 %330
    %332 = vrot.lane.b32.xlu0 %v292, 126
    %v333 = vpop.permute.xlu0 %332
    %334 = vrot.lane.b32.xlu0 %v293, 126
    %v335 = vpop.permute.xlu0 %334
    %336 = vrot.lane.b32.xlu0 %v294, 126
    %v337 = vpop.permute.xlu0 %336
    %338 = vrot.lane.b32.xlu0 %v295, 126
    %v339 = vpop.permute.xlu0 %338
    %340 = vrot.lane.b32.xlu0 %v296, 126
    %v341 = vpop.permute.xlu0 %340
    %342 = vrot.lane.b32.xlu0 %v297, 126
    %v343 = vpop.permute.xlu0 %342
    %344 = vrot.lane.b32.xlu0 %v298, 126
    %v345 = vpop.permute.xlu0 %344
    %346 = vrot.lane.b32.xlu0 %v299, 126
    %v347 = vpop.permute.xlu0 %346
    %v364 = vadd.f32 %v268, %v317
    %v365 = vadd.f32 %v269, %v319
    %v366 = vadd.f32 %v270, %v321
    %v367 = vadd.f32 %v271, %v323
    %v368 = vadd.f32 %v272, %v325
    %v369 = vadd.f32 %v273, %v327
    %v370 = vadd.f32 %v274, %v329
    %v371 = vadd.f32 %v275, %v331
    %v372 = vadd.f32 %v276, %v333
    %v373 = vadd.f32 %v277, %v335
    %v374 = vadd.f32 %v278, %v337
    %v375 = vadd.f32 %v279, %v339
    %v376 = vadd.f32 %v280, %v341
    %v377 = vadd.f32 %v281, %v343
    %v378 = vadd.f32 %v282, %v345
    %v379 = vadd.f32 %v283, %v347
    %380 = vrot.lane.b32.xlu0 %v188, 125
    %v381 = vpop.permute.xlu0 %380
    %382 = vrot.lane.b32.xlu0 %v189, 125
    %v383 = vpop.permute.xlu0 %382
    %384 = vrot.lane.b32.xlu0 %v190, 125
    %v385 = vpop.permute.xlu0 %384
    %386 = vrot.lane.b32.xlu0 %v191, 125
    %v387 = vpop.permute.xlu0 %386
    %388 = vrot.lane.b32.xlu0 %v192, 125
    %v389 = vpop.permute.xlu0 %388
    %390 = vrot.lane.b32.xlu0 %v193, 125
    %v391 = vpop.permute.xlu0 %390
    %392 = vrot.lane.b32.xlu0 %v194, 125
    %v393 = vpop.permute.xlu0 %392
    %394 = vrot.lane.b32.xlu0 %v195, 125
    %v395 = vpop.permute.xlu0 %394
    %396 = vrot.lane.b32.xlu0 %v196, 125
    %v397 = vpop.permute.xlu0 %396
    %398 = vrot.lane.b32.xlu0 %v197, 125
    %v399 = vpop.permute.xlu0 %398
    %400 = vrot.lane.b32.xlu0 %v198, 125
    %v401 = vpop.permute.xlu0 %400
    %402 = vrot.lane.b32.xlu0 %v199, 125
    %v403 = vpop.permute.xlu0 %402
    %404 = vrot.lane.b32.xlu0 %v200, 125
    %v405 = vpop.permute.xlu0 %404
    %406 = vrot.lane.b32.xlu0 %v201, 125
    %v407 = vpop.permute.xlu0 %406
    %408 = vrot.lane.b32.xlu0 %v202, 125
    %v409 = vpop.permute.xlu0 %408
    %410 = vrot.lane.b32.xlu0 %v203, 125
    %v411 = vpop.permute.xlu0 %410
    %v428 = vadd.f32 %v364, %v381
    %v429 = vadd.f32 %v365, %v383
    %v430 = vadd.f32 %v366, %v385
    %v431 = vadd.f32 %v367, %v387
    %v432 = vadd.f32 %v368, %v389
    %v433 = vadd.f32 %v369, %v391
    %v434 = vadd.f32 %v370, %v393
    %v435 = vadd.f32 %v371, %v395
    %v436 = vadd.f32 %v372, %v397
    %v437 = vadd.f32 %v373, %v399
    %v438 = vadd.f32 %v374, %v401
    %v439 = vadd.f32 %v375, %v403
    %v440 = vadd.f32 %v376, %v405
    %v441 = vadd.f32 %v377, %v407
    %v442 = vadd.f32 %v378, %v409
    %v443 = vadd.f32 %v379, %v411
    %460 = vrot.lane.b32.xlu0 %v172, 124
    %v461 = vpop.permute.xlu0 %460
    %462 = vrot.lane.b32.xlu0 %v173, 124
    %v463 = vpop.permute.xlu0 %462
    %464 = vrot.lane.b32.xlu0 %v174, 124
    %v465 = vpop.permute.xlu0 %464
    %466 = vrot.lane.b32.xlu0 %v175, 124
    %v467 = vpop.permute.xlu0 %466
    %468 = vrot.lane.b32.xlu0 %v176, 124
    %v469 = vpop.permute.xlu0 %468
    %470 = vrot.lane.b32.xlu0 %v177, 124
    %v471 = vpop.permute.xlu0 %470
    %472 = vrot.lane.b32.xlu0 %v178, 124
    %v473 = vpop.permute.xlu0 %472
    %474 = vrot.lane.b32.xlu0 %v179, 124
    %v475 = vpop.permute.xlu0 %474
    %476 = vrot.lane.b32.xlu0 %v180, 124
    %v477 = vpop.permute.xlu0 %476
    %478 = vrot.lane.b32.xlu0 %v181, 124
    %v479 = vpop.permute.xlu0 %478
    %480 = vrot.lane.b32.xlu0 %v182, 124
    %v481 = vpop.permute.xlu0 %480
    %482 = vrot.lane.b32.xlu0 %v183, 124
    %v483 = vpop.permute.xlu0 %482
    %484 = vrot.lane.b32.xlu0 %v184, 124
    %v485 = vpop.permute.xlu0 %484
    %486 = vrot.lane.b32.xlu0 %v185, 124
    %v487 = vpop.permute.xlu0 %486
    %488 = vrot.lane.b32.xlu0 %v186, 124
    %v489 = vpop.permute.xlu0 %488
    %490 = vrot.lane.b32.xlu0 %v187, 124
    %v491 = vpop.permute.xlu0 %490
    %v508 = vadd.f32 %v428, %v461
    %v509 = vadd.f32 %v429, %v463
    %v510 = vadd.f32 %v430, %v465
    %v511 = vadd.f32 %v431, %v467
    %v512 = vadd.f32 %v432, %v469
    %v513 = vadd.f32 %v433, %v471
    %v514 = vadd.f32 %v434, %v473
    %v515 = vadd.f32 %v435, %v475
    %v516 = vadd.f32 %v436, %v477
    %v517 = vadd.f32 %v437, %v479
    %v518 = vadd.f32 %v438, %v481
    %v519 = vadd.f32 %v439, %v483
    %v520 = vadd.f32 %v440, %v485
    %v521 = vadd.f32 %v441, %v487
    %v522 = vadd.f32 %v442, %v489
    %v523 = vadd.f32 %v443, %v491
    %vm524 = vcmask 123904
    %525 = vst.msk [vmem:[#allocation3] sm:$0x3] %vm524, 0.0
    %526 = vst.msk [vmem:[#allocation3 + $0x18] sm:$0x3] %vm524, 0.0
    %527 = vst.msk [vmem:[#allocation3 + $0x30] sm:$0x3] %vm524, 0.0
    %528 = vst.msk [vmem:[#allocation3 + $0x48] sm:$0x3] %vm524, 0.0
    %529 = vst.msk [vmem:[#allocation3 + $0x60] sm:$0x3] %vm524, 0.0
    %530 = vst.msk [vmem:[#allocation3 + $0x78] sm:$0x3] %vm524, 0.0
    %531 = vst.msk [vmem:[#allocation3 + $0x90] sm:$0x3] %vm524, 0.0
    %532 = vst.msk [vmem:[#allocation3 + $0xa8] sm:$0x3] %vm524, 0.0
    %533 = vst.msk [vmem:[#allocation3 + $0x12] sm:$0x3] %vm524, 0.0
    %534 = vst.msk [vmem:[#allocation3 + $0x2a] sm:$0x3] %vm524, 0.0
    %535 = vst.msk [vmem:[#allocation3 + $0x42] sm:$0x3] %vm524, 0.0
    %536 = vst.msk [vmem:[#allocation3 + $0x5a] sm:$0x3] %vm524, 0.0
    %537 = vst.msk [vmem:[#allocation3 + $0x72] sm:$0x3] %vm524, 0.0
    %538 = vst.msk [vmem:[#allocation3 + $0x8a] sm:$0x3] %vm524, 0.0
    %539 = vst.msk [vmem:[#allocation3 + $0xa2] sm:$0x3] %vm524, 0.0
    %540 = vst.msk [vmem:[#allocation3 + $0xba] sm:$0x3] %vm524, 0.0
    %vm541 = vcmask 130048
    %542 = vst.msk [vmem:[#allocation3 + $0x2] sm:$0xff] %vm541, %v508
    %543 = vst.msk [vmem:[#allocation3 + $0xa] sm:$0xff] %vm541, %v509
    %544 = vst.msk [vmem:[#allocation3 + $0x1a] sm:$0xff] %vm541, %v510
    %545 = vst.msk [vmem:[#allocation3 + $0x22] sm:$0xff] %vm541, %v511
    %546 = vst.msk [vmem:[#allocation3 + $0x32] sm:$0xff] %vm541, %v512
    %547 = vst.msk [vmem:[#allocation3 + $0x3a] sm:$0xff] %vm541, %v513
    %548 = vst.msk [vmem:[#allocation3 + $0x4a] sm:$0xff] %vm541, %v514
    %549 = vst.msk [vmem:[#allocation3 + $0x52] sm:$0xff] %vm541, %v515
    %550 = vst.msk [vmem:[#allocation3 + $0x62] sm:$0xff] %vm541, %v516
    %551 = vst.msk [vmem:[#allocation3 + $0x6a] sm:$0xff] %vm541, %v517
    %552 = vst.msk [vmem:[#allocation3 + $0x7a] sm:$0xff] %vm541, %v518
    %553 = vst.msk [vmem:[#allocation3 + $0x82] sm:$0xff] %vm541, %v519
    %554 = vst.msk [vmem:[#allocation3 + $0x92] sm:$0xff] %vm541, %v520
    %555 = vst.msk [vmem:[#allocation3 + $0x9a] sm:$0xff] %vm541, %v521
    %556 = vst.msk [vmem:[#allocation3 + $0xaa] sm:$0xff] %vm541, %v522
    %557 = vst.msk [vmem:[#allocation3 + $0xb2] sm:$0xff] %vm541, %v523
    %v558 = vld [vmem:[#allocation3] sm:$0xff]
    %v559 = vld [vmem:[#allocation3 + $0x8] sm:$0xff]
    %v560 = vld [vmem:[#allocation3 + $0x18] sm:$0xff]
    %v561 = vld [vmem:[#allocation3 + $0x20] sm:$0xff]
    %v562 = vld [vmem:[#allocation3 + $0x30] sm:$0xff]
    %v563 = vld [vmem:[#allocation3 + $0x38] sm:$0xff]
    %v564 = vld [vmem:[#allocation3 + $0x48] sm:$0xff]
    %v565 = vld [vmem:[#allocation3 + $0x50] sm:$0xff]
    %v566 = vld [vmem:[#allocation3 + $0x60] sm:$0xff]
    %v567 = vld [vmem:[#allocation3 + $0x68] sm:$0xff]
    %v568 = vld [vmem:[#allocation3 + $0x78] sm:$0xff]
    %v569 = vld [vmem:[#allocation3 + $0x80] sm:$0xff]
    %v570 = vld [vmem:[#allocation3 + $0x90] sm:$0xff]
    %v571 = vld [vmem:[#allocation3 + $0x98] sm:$0xff]
    %v572 = vld [vmem:[#allocation3 + $0xa8] sm:$0xff]
    %v573 = vld [vmem:[#allocation3 + $0xb0] sm:$0xff]
    %v574 = vmul.f32 %v558, 0.028041523
    %v575 = vmul.f32 %v559, 0.028041523
    %v576 = vmul.f32 %v560, 0.028041523
    %v577 = vmul.f32 %v561, 0.028041523
    %v578 = vmul.f32 %v562, 0.028041523
    %v579 = vmul.f32 %v563, 0.028041523
    %v580 = vmul.f32 %v564, 0.028041523
    %v581 = vmul.f32 %v565, 0.028041523
    %v582 = vmul.f32 %v566, 0.028041523
    %v583 = vmul.f32 %v567, 0.028041523
    %v584 = vmul.f32 %v568, 0.028041523
    %v585 = vmul.f32 %v569, 0.028041523
    %v586 = vmul.f32 %v570, 0.028041523
    %v587 = vmul.f32 %v571, 0.028041523
    %v588 = vmul.f32 %v572, 0.028041523
    %v589 = vmul.f32 %v573, 0.028041523
    %v590 = vld [vmem:[#allocation3 + $0x1] sm:$0xff]
    %v591 = vld [vmem:[#allocation3 + $0x9] sm:$0xff]
    %v592 = vld [vmem:[#allocation3 + $0x19] sm:$0xff]
    %v593 = vld [vmem:[#allocation3 + $0x21] sm:$0xff]
    %v594 = vld [vmem:[#allocation3 + $0x31] sm:$0xff]
    %v595 = vld [vmem:[#allocation3 + $0x39] sm:$0xff]
    %v596 = vld [vmem:[#allocation3 + $0x49] sm:$0xff]
    %v597 = vld [vmem:[#allocation3 + $0x51] sm:$0xff]
    %v598 = vld [vmem:[#allocation3 + $0x61] sm:$0xff]
    %v599 = vld [vmem:[#allocation3 + $0x69] sm:$0xff]
    %v600 = vld [vmem:[#allocation3 + $0x79] sm:$0xff]
    %v601 = vld [vmem:[#allocation3 + $0x81] sm:$0xff]
    %v602 = vld [vmem:[#allocation3 + $0x91] sm:$0xff]
    %v603 = vld [vmem:[#allocation3 + $0x99] sm:$0xff]
    %v604 = vld [vmem:[#allocation3 + $0xa9] sm:$0xff]
    %v605 = vld [vmem:[#allocation3 + $0xb1] sm:$0xff]
    %v606 = vmul.f32 %v590, 0.23392642
    %v607 = vmul.f32 %v591, 0.23392642
    %v608 = vmul.f32 %v592, 0.23392642
    %v609 = vmul.f32 %v593, 0.23392642
    %v610 = vmul.f32 %v594, 0.23392642
    %v611 = vmul.f32 %v595, 0.23392642
    %v612 = vmul.f32 %v596, 0.23392642
    %v613 = vmul.f32 %v597, 0.23392642
    %v614 = vmul.f32 %v598, 0.23392642
    %v615 = vmul.f32 %v599, 0.23392642
    %v616 = vmul.f32 %v600, 0.23392642
    %v617 = vmul.f32 %v601, 0.23392642
    %v618 = vmul.f32 %v602, 0.23392642
    %v619 = vmul.f32 %v603, 0.23392642
    %v620 = vmul.f32 %v604, 0.23392642
    %v621 = vmul.f32 %v605, 0.23392642
    %v622 = vadd.f32 %v574, %v606
    %v623 = vadd.f32 %v575, %v607
    %v624 = vadd.f32 %v576, %v608
    %v625 = vadd.f32 %v577, %v609
    %v626 = vadd.f32 %v578, %v610
    %v627 = vadd.f32 %v579, %v611
    %v628 = vadd.f32 %v580, %v612
    %v629 = vadd.f32 %v581, %v613
    %v630 = vadd.f32 %v582, %v614
    %v631 = vadd.f32 %v583, %v615
    %v632 = vadd.f32 %v584, %v616
    %v633 = vadd.f32 %v585, %v617
    %v634 = vadd.f32 %v586, %v618
    %v635 = vadd.f32 %v587, %v619
    %v636 = vadd.f32 %v588, %v620
    %v637 = vadd.f32 %v589, %v621
    %v638 = vld [vmem:[#allocation3 + $0x2] sm:$0xff]
    %v639 = vld [vmem:[#allocation3 + $0xa] sm:$0xff]
    %v640 = vld [vmem:[#allocation3 + $0x1a] sm:$0xff]
    %v641 = vld [vmem:[#allocation3 + $0x22] sm:$0xff]
    %v642 = vld [vmem:[#allocation3 + $0x32] sm:$0xff]
    %v643 = vld [vmem:[#allocation3 + $0x3a] sm:$0xff]
    %v644 = vld [vmem:[#allocation3 + $0x4a] sm:$0xff]
    %v645 = vld [vmem:[#allocation3 + $0x52] sm:$0xff]
    %v646 = vld [vmem:[#allocation3 + $0x62] sm:$0xff]
    %v647 = vld [vmem:[#allocation3 + $0x6a] sm:$0xff]
    %v648 = vld [vmem:[#allocation3 + $0x7a] sm:$0xff]
    %v649 = vld [vmem:[#allocation3 + $0x82] sm:$0xff]
    %v650 = vld [vmem:[#allocation3 + $0x92] sm:$0xff]
    %v651 = vld [vmem:[#allocation3 + $0x9a] sm:$0xff]
    %v652 = vld [vmem:[#allocation3 + $0xaa] sm:$0xff]
    %v653 = vld [vmem:[#allocation3 + $0xb2] sm:$0xff]
    %v654 = vmul.f32 %v638, 0.4744297
    %v655 = vmul.f32 %v639, 0.4744297
    %v656 = vmul.f32 %v640, 0.4744297
    %v657 = vmul.f32 %v641, 0.4744297
    %v658 = vmul.f32 %v642, 0.4744297
    %v659 = vmul.f32 %v643, 0.4744297
    %v660 = vmul.f32 %v644, 0.4744297
    %v661 = vmul.f32 %v645, 0.4744297
    %v662 = vmul.f32 %v646, 0.4744297
    %v663 = vmul.f32 %v647, 0.4744297
    %v664 = vmul.f32 %v648, 0.4744297
    %v665 = vmul.f32 %v649, 0.4744297
    %v666 = vmul.f32 %v650, 0.4744297
    %v667 = vmul.f32 %v651, 0.4744297
    %v668 = vmul.f32 %v652, 0.4744297
    %v669 = vmul.f32 %v653, 0.4744297
    %v670 = vadd.f32 %v622, %v654
    %v671 = vadd.f32 %v623, %v655
    %v672 = vadd.f32 %v624, %v656
    %v673 = vadd.f32 %v625, %v657
    %v674 = vadd.f32 %v626, %v658
    %v675 = vadd.f32 %v627, %v659
    %v676 = vadd.f32 %v628, %v660
    %v677 = vadd.f32 %v629, %v661
    %v678 = vadd.f32 %v630, %v662
    %v679 = vadd.f32 %v631, %v663
    %v680 = vadd.f32 %v632, %v664
    %v681 = vadd.f32 %v633, %v665
    %v682 = vadd.f32 %v634, %v666
    %v683 = vadd.f32 %v635, %v667
    %v684 = vadd.f32 %v636, %v668
    %v685 = vadd.f32 %v637, %v669
    %v686 = vld [vmem:[#allocation3 + $0x3] sm:$0xff]
    %v687 = vld [vmem:[#allocation3 + $0xb] sm:$0xff]
    %v688 = vld [vmem:[#allocation3 + $0x1b] sm:$0xff]
    %v689 = vld [vmem:[#allocation3 + $0x23] sm:$0xff]
    %v690 = vld [vmem:[#allocation3 + $0x33] sm:$0xff]
    %v691 = vld [vmem:[#allocation3 + $0x3b] sm:$0xff]
    %v692 = vld [vmem:[#allocation3 + $0x4b] sm:$0xff]
    %v693 = vld [vmem:[#allocation3 + $0x53] sm:$0xff]
    %v694 = vld [vmem:[#allocation3 + $0x63] sm:$0xff]
    %v695 = vld [vmem:[#allocation3 + $0x6b] sm:$0xff]
    %v696 = vld [vmem:[#allocation3 + $0x7b] sm:$0xff]
    %v697 = vld [vmem:[#allocation3 + $0x83] sm:$0xff]
    %v698 = vld [vmem:[#allocation3 + $0x93] sm:$0xff]
    %v699 = vld [vmem:[#allocation3 + $0x9b] sm:$0xff]
    %v700 = vld [vmem:[#allocation3 + $0xab] sm:$0xff]
    %v701 = vld [vmem:[#allocation3 + $0xb3] sm:$0xff]
    %v702 = vmul.f32 %v686, 0.23392642
    %v703 = vmul.f32 %v687, 0.23392642
    %v704 = vmul.f32 %v688, 0.23392642
    %v705 = vmul.f32 %v689, 0.23392642
    %v706 = vmul.f32 %v690, 0.23392642
    %v707 = vmul.f32 %v691, 0.23392642
    %v708 = vmul.f32 %v692, 0.23392642
    %v709 = vmul.f32 %v693, 0.23392642
    %v710 = vmul.f32 %v694, 0.23392642
    %v711 = vmul.f32 %v695, 0.23392642
    %v712 = vmul.f32 %v696, 0.23392642
    %v713 = vmul.f32 %v697, 0.23392642
    %v714 = vmul.f32 %v698, 0.23392642
    %v715 = vmul.f32 %v699, 0.23392642
    %v716 = vmul.f32 %v700, 0.23392642
    %v717 = vmul.f32 %v701, 0.23392642
    %v718 = vadd.f32 %v670, %v702
    %v719 = vadd.f32 %v671, %v703
    %v720 = vadd.f32 %v672, %v704
    %v721 = vadd.f32 %v673, %v705
    %v722 = vadd.f32 %v674, %v706
    %v723 = vadd.f32 %v675, %v707
    %v724 = vadd.f32 %v676, %v708
    %v725 = vadd.f32 %v677, %v709
    %v726 = vadd.f32 %v678, %v710
    %v727 = vadd.f32 %v679, %v711
    %v728 = vadd.f32 %v680, %v712
    %v729 = vadd.f32 %v681, %v713
    %v730 = vadd.f32 %v682, %v714
    %v731 = vadd.f32 %v683, %v715
    %v732 = vadd.f32 %v684, %v716
    %v733 = vadd.f32 %v685, %v717
    %v734 = vld [vmem:[#allocation3 + $0x4] sm:$0xff]
    %v735 = vld [vmem:[#allocation3 + $0xc] sm:$0xff]
    %v736 = vld [vmem:[#allocation3 + $0x1c] sm:$0xff]
    %v737 = vld [vmem:[#allocation3 + $0x24] sm:$0xff]
    %v738 = vld [vmem:[#allocation3 + $0x34] sm:$0xff]
    %v739 = vld [vmem:[#allocation3 + $0x3c] sm:$0xff]
    %v740 = vld [vmem:[#allocation3 + $0x4c] sm:$0xff]
    %v741 = vld [vmem:[#allocation3 + $0x54] sm:$0xff]
    %v742 = vld [vmem:[#allocation3 + $0x64] sm:$0xff]
    %v743 = vld [vmem:[#allocation3 + $0x6c] sm:$0xff]
    %v744 = vld [vmem:[#allocation3 + $0x7c] sm:$0xff]
    %v745 = vld [vmem:[#allocation3 + $0x84] sm:$0xff]
    %v746 = vld [vmem:[#allocation3 + $0x94] sm:$0xff]
    %v747 = vld [vmem:[#allocation3 + $0x9c] sm:$0xff]
    %v748 = vld [vmem:[#allocation3 + $0xac] sm:$0xff]
    %v749 = vld [vmem:[#allocation3 + $0xb4] sm:$0xff]
    %v750 = vmul.f32 %v734, 0.028041523
    %v751 = vmul.f32 %v735, 0.028041523
    %v752 = vmul.f32 %v736, 0.028041523
    %v753 = vmul.f32 %v737, 0.028041523
    %v754 = vmul.f32 %v738, 0.028041523
    %v755 = vmul.f32 %v739, 0.028041523
    %v756 = vmul.f32 %v740, 0.028041523
    %v757 = vmul.f32 %v741, 0.028041523
    %v758 = vmul.f32 %v742, 0.028041523
    %v759 = vmul.f32 %v743, 0.028041523
    %v760 = vmul.f32 %v744, 0.028041523
    %v761 = vmul.f32 %v745, 0.028041523
    %v762 = vmul.f32 %v746, 0.028041523
    %v763 = vmul.f32 %v747, 0.028041523
    %v764 = vmul.f32 %v748, 0.028041523
    %v765 = vmul.f32 %v749, 0.028041523
    %v766 = vadd.f32 %v718, %v750
    %v767 = vadd.f32 %v719, %v751
    %v768 = vadd.f32 %v720, %v752
    %v769 = vadd.f32 %v721, %v753
    %v770 = vadd.f32 %v722, %v754
    %v771 = vadd.f32 %v723, %v755
    %v772 = vadd.f32 %v724, %v756
    %v773 = vadd.f32 %v725, %v757
    %v774 = vadd.f32 %v726, %v758
    %v775 = vadd.f32 %v727, %v759
    %v776 = vadd.f32 %v728, %v760
    %v777 = vadd.f32 %v729, %v761
    %v778 = vadd.f32 %v730, %v762
    %v779 = vadd.f32 %v731, %v763
    %v780 = vadd.f32 %v732, %v764
    %v781 = vadd.f32 %v733, %v765
    %782 = vst.msk [vmem:[#allocation7] sm:$0xff] %vm541, %v766
    %783 = vst.msk [vmem:[#allocation7 + $0x8] sm:$0xff] %vm541, %v767
    %784 = vst.msk [vmem:[#allocation7 + $0x10] sm:$0xff] %vm541, %v768
    %785 = vst.msk [vmem:[#allocation7 + $0x18] sm:$0xff] %vm541, %v769
    %786 = vst.msk [vmem:[#allocation7 + $0x20] sm:$0xff] %vm541, %v770
    %787 = vst.msk [vmem:[#allocation7 + $0x28] sm:$0xff] %vm541, %v771
    %788 = vst.msk [vmem:[#allocation7 + $0x30] sm:$0xff] %vm541, %v772
    %789 = vst.msk [vmem:[#allocation7 + $0x38] sm:$0xff] %vm541, %v773
    %790 = vst.msk [vmem:[#allocation7 + $0x40] sm:$0xff] %vm541, %v774
    %791 = vst.msk [vmem:[#allocation7 + $0x48] sm:$0xff] %vm541, %v775
    %792 = vst.msk [vmem:[#allocation7 + $0x50] sm:$0xff] %vm541, %v776
    %793 = vst.msk [vmem:[#allocation7 + $0x58] sm:$0xff] %vm541, %v777
    %794 = vst.msk [vmem:[#allocation7 + $0x60] sm:$0xff] %vm541, %v778
    %795 = vst.msk [vmem:[#allocation7 + $0x68] sm:$0xff] %vm541, %v779
    %796 = vst.msk [vmem:[#allocation7 + $0x70] sm:$0xff] %vm541, %v780
    %797 = vst.msk [vmem:[#allocation7 + $0x78] sm:$0xff] %vm541, %v781
    // Predicated region
    $region10: #{tpu_custom_call.1} parent=1 // pred_check
      _
    $region11: #{tpu_custom_call.1} parent=1 // pred_check_branch
      %799 = sbr.rel (0) target = $region13
    $region12: #{tpu_custom_call.1} parent=1 // pred_region
      %801 = vsyncadd [#allocation6], 0
      %s802 = sshll.u32 [#allocation7], 4
      %s803 = int_to_ptr.vmem [resolvable:$true] %s802
      %s804 = sshll.u32 %s1, 4
      %s805 = int_to_ptr.hbm [resolvable:$true] %s804
      %810 = dma.vmem_to_hbm [thread:$0]  %s803, 2048, %s805, [#allocation6], 128, 128, 8
    $region13: #{tpu_custom_call.1} parent=1 // pred_fallthru
      _
    // Predicated region
    $region14: #{tpu_custom_call.1} parent=1 // pred_check
      _
    $region15: #{tpu_custom_call.1} parent=1 // pred_check_branch
      %812 = sbr.rel (0) target = $region17
    $region16: #{tpu_custom_call.1} parent=1 // pred_region
      %814 = dma.done [#allocation6], 2048
    $region17: #{tpu_custom_call.1} parent=1 // pred_fallthru
      _
    %815 = vsyncpa [#allocation5], 1
    %816 = vsyncpa [#allocation6], 1

</llo_original>
